<compile_context>
chip_gen: v6e
topology: v6e:2x2x1
jax: 0.10.0
libtpu: 0.0.40
codegen_flags: <defaults>
</compile_context>

<pallas_src>
import functools

import jax
import jax.numpy as jnp
from jax.experimental import pallas as pl
from jax.experimental.pallas import tpu as pltpu

LANE = 128
TILE_B_CAP = 4096            # review: raise from 512; blocks stay ~10 MB of VMEM
MATMUL_DTYPE = jnp.float32   # flip to jnp.bfloat16 on v5e/v6e/v7x for ~2x less HBM


def _round_up(x, m):
    return ((x + m - 1) // m) * m


def _cdiv(a, b):
    return (a + b - 1) // b


def _tile_b_for(batch):
    # >= 2 grid steps whenever possible (v7x megacore), capped for VMEM.
    return min(TILE_B_CAP, max(LANE, _round_up(_cdiv(batch, 2), LANE)))


# Contract over the feature (last) dim of both operands: the MXU-native
# A @ B^T (flash-attention) form. Lets batch-major HBM arrays feed
# batch-on-lane compute without any transpose.
_LAST_DIMS = (((1,), (1,)), ((), ()))


def _mlp_transposed(x, w1t_ref, b1_ref, w2t_ref, b2_ref, w3t_ref, b3_ref,
                    mm_dtype):
    f32 = jnp.float32
    # (H, S) x (TB, S) -> (H, TB): batch lands on the lane axis, dense vregs.
    h1t = jnp.tanh(
        jax.lax.dot_general(w1t_ref[...], x, _LAST_DIMS,
                            preferred_element_type=f32) + b1_ref[...])
    h2t = jnp.tanh(
        jnp.dot(w2t_ref[...], h1t.astype(mm_dtype),
                preferred_element_type=f32) + b2_ref[...])
    mu_t = (jnp.dot(w3t_ref[...], h2t.astype(mm_dtype),
                    preferred_element_type=f32) + b3_ref[...])       # (A, TB)
    return mu_t


def _actor_logp_kernel(x_ref, a_ref, eye_ref, w1t_ref, b1_ref, w2t_ref, b2_ref,
                       w3t_ref, b3_ref, inv_std_ref, nbias_ref,
                       mu_t_ref, logp_ref, *, mm_dtype):
    mu_t = _mlp_transposed(x_ref[...], w1t_ref, b1_ref, w2t_ref, b2_ref,
                           w3t_ref, b3_ref, mm_dtype)
    mu_t_ref[...] = mu_t                                             # lane-dense store

    # Transpose act (TB, A) -> (A, TB) on the MXU via identity @ act^T, so the
    # HBM-side act layout stays natural (no wrapper transpose, no lane pad).
    a_t = jax.lax.dot_general(eye_ref[...], a_ref[...], _LAST_DIMS,
                              preferred_element_type=jnp.float32)    # (A, TB)

    # logp = sum_a [-0.5*((a-mu)/std)^2 - log_std - 0.5*log(2*pi)]
    z = (a_t - mu_t) * inv_std_ref[...]
    term = nbias_ref[...] - 0.5 * (z * z)                            # (A, TB)
    logp_ref[...] = jnp.sum(term, axis=0, keepdims=True)             # (1, TB)


def _actor_mu_kernel(x_ref, w1t_ref, b1_ref, w2t_ref, b2_ref, w3t_ref, b3_ref,
                     mu_t_ref, *, mm_dtype):
    mu_t_ref[...] = _mlp_transposed(x_ref[...], w1t_ref, b1_ref, w2t_ref,
                                    b2_ref, w3t_ref, b3_ref, mm_dtype)


def _prep_params(params, mm):
    w1, b1, w2, b2, w3, b3, log_std = params
    f32 = jnp.float32
    w1t = w1.T.astype(mm)                    # (H, S)
    w2t = w2.T.astype(mm)                    # (H, H)
    w3t = w3.T.astype(mm)                    # (A, H)
    b1c = b1.astype(f32).reshape(-1, 1)      # (H, 1) -> broadcast along lanes
    b2c = b2.astype(f32).reshape(-1, 1)
    b3c = b3.astype(f32).reshape(-1, 1)      # (A, 1)
    return w1t, b1c, w2t, b2c, w3t, b3c, log_std


def _common_specs(tile_b):
    resident = lambda shape: pl.BlockSpec(shape, lambda i: (0, 0))
    batch_rows = lambda cols: pl.BlockSpec((tile_b, cols), lambda i: (i, 0))
    batch_lanes = lambda rows: pl.BlockSpec((rows, tile_b), lambda i: (0, i))
    return resident, batch_rows, batch_lanes


_COMPILER_PARAMS = pltpu.CompilerParams(
    dimension_semantics=("parallel",),        # megacore sharding on v7x
    vmem_limit_bytes=32 * 1024 * 1024)


@jax.jit
def _actor_forward_logp(states, act, params):
    f32 = jnp.float32
    mm = MATMUL_DTYPE
    w1t, b1c, w2t, b2c, w3t, b3c, log_std = _prep_params(params, mm)
    B, S = states.shape
    H = w1t.shape[0]
    A = w3t.shape[0]

    tile_b = _tile_b_for(B)
    B_pad = _round_up(B, tile_b)
    num_tiles = B_pad // tile_b

    x = states.astype(mm)
    a = act.astype(f32)
    if B_pad != B:   # batch-only padding (feature dims are never padded)
        x = jnp.pad(x, ((0, B_pad - B), (0, 0)))
        a = jnp.pad(a, ((0, B_pad - B), (0, 0)))

    inv_std = jnp.exp(-log_std).astype(f32).reshape(-1, 1)                    # (A,1)
    nbias = (-log_std - 0.5 * jnp.log(2.0 * jnp.pi)).astype(f32).reshape(-1, 1)
    eye_a = jnp.eye(A, dtype=f32)

    resident, batch_rows, batch_lanes = _common_specs(tile_b)

    flops = 2 * B_pad * (S * H + H * H + H * A + A * A) + 6 * B_pad * A
    transcendentals = 2 * B_pad * H
    bytes_accessed = 4 * (B_pad * (S + A) + B_pad * (A + 1)
                          + H * S + H * H + A * H + 3 * H + 4 * A)

    mu_t, logp_row = pl.pallas_call(
        functools.partial(_actor_logp_kernel, mm_dtype=mm),
        grid=(num_tiles,),
        in_specs=[
            batch_rows(S),            # states   (tile_b, S)  natural, no lane pad
            batch_rows(A),            # act      (tile_b, A)
            resident((A, A)),         # identity (MXU transpose of act)
            resident((H, S)),         # w1^T     (VMEM-resident across grid steps)
            resident((H, 1)),         # b1
            resident((H, H)),         # w2^T
            resident((H, 1)),         # b2
            resident((A, H)),         # w3^T
            resident((A, 1)),         # b3
            resident((A, 1)),         # exp(-log_std)
            resident((A, 1)),         # -log_std - 0.5*log(2*pi)
        ],
        out_specs=(
            batch_lanes(A),           # mu^T   (A, tile_b)  lane-dense
            batch_lanes(1),           # logp   (1, tile_b)  lane-dense
        ),
        out_shape=(
            jax.ShapeDtypeStruct((A, B_pad), f32),
            jax.ShapeDtypeStruct((1, B_pad), f32),
        ),
        compiler_params=_COMPILER_PARAMS,
        cost_estimate=pl.CostEstimate(
            flops=flops, transcendentals=transcendentals,
            bytes_accessed=bytes_accessed),
    )(x, a, eye_a, w1t, b1c, w2t, b2c, w3t, b3c, inv_std, nbias)

    mu = mu_t[:, :B].T
    logp = logp_row[0, :B]
    std = jnp.exp(log_std)
    return mu, std, logp


@jax.jit
def _actor_forward_mu(states, params):
    f32 = jnp.float32
    mm = MATMUL_DTYPE
    w1t, b1c, w2t, b2c, w3t, b3c, log_std = _prep_params(params, mm)
    B, S = states.shape
    H = w1t.shape[0]
    A = w3t.shape[0]

    tile_b = _tile_b_for(B)
    B_pad = _round_up(B, tile_b)
    num_tiles = B_pad // tile_b

    x = states.astype(mm)
    if B_pad != B:
        x = jnp.pad(x, ((0, B_pad - B), (0, 0)))

    resident, batch_rows, batch_lanes = _common_specs(tile_b)

    flops = 2 * B_pad * (S * H + H * H + H * A)
    transcendentals = 2 * B_pad * H
    bytes_accessed = 4 * (B_pad * S + B_pad * A
                          + H * S + H * H + A * H + 2 * H + A)

    mu_t = pl.pallas_call(
        functools.partial(_actor_mu_kernel, mm_dtype=mm),
        grid=(num_tiles,),
        in_specs=[
            batch_rows(S),            # states
            resident((H, S)),         # w1^T
            resident((H, 1)),         # b1
            resident((H, H)),         # w2^T
            resident((H, 1)),         # b2
            resident((A, H)),         # w3^T
            resident((A, 1)),         # b3
        ],
        out_specs=batch_lanes(A),     # mu^T (A, tile_b) lane-dense
        out_shape=jax.ShapeDtypeStruct((A, B_pad), f32),
        compiler_params=_COMPILER_PARAMS,
        cost_estimate=pl.CostEstimate(
            flops=flops, transcendentals=transcendentals,
            bytes_accessed=bytes_accessed),
    )(x, w1t, b1c, w2t, b2c, w3t, b3c)

    mu = mu_t[:, :B].T
    std = jnp.exp(log_std)
    return mu, std


def actor_forward(states, params, act=None):
    """Pallas forward for Actor.

    Returns (mu, std, logp_a). (mu, std) parameterize the Normal policy `pi`
    (the torch.distributions.Normal object itself has no array equivalent);
    logp_a is None when `act` is None, matching the PyTorch forward.
    """
    if act is None:
        mu, std = _actor_forward_mu(states, params)
        return mu, std, None
    return _actor_forward_logp(states, act, params)


def init_params(key, state_size, action_size, hidden_nodes):
    """Deterministic synthetic init matching the module's parameter shapes."""
    k1, k2, k3 = jax.random.split(key, 3)
    s = 0.1
    w1 = s * jax.random.normal(k1, (state_size, hidden_nodes), jnp.float32)
    b1 = jnp.zeros((hidden_nodes,), jnp.float32)
    w2 = s * jax.random.normal(k2, (hidden_nodes, hidden_nodes), jnp.float32)
    b2 = jnp.zeros((hidden_nodes,), jnp.float32)
    w3 = s * jax.random.normal(k3, (hidden_nodes, action_size), jnp.float32)
    b3 = jnp.zeros((action_size,), jnp.float32)
    log_std = -0.5 * jnp.ones((action_size,), jnp.float32)   # Parameter init
    return (w1, b1, w2, b2, w3, b3, log_std)


def _reference(states, act, params):
    """Pure-JAX reference of the PyTorch forward for verification."""
    w1, b1, w2, b2, w3, b3, log_std = params
    h1 = jnp.tanh(states @ w1 + b1)
    h2 = jnp.tanh(h1 @ w2 + b2)
    mu = h2 @ w3 + b3
    std = jnp.exp(log_std)
    logp = (-((act - mu) ** 2) / (2.0 * std ** 2)
            - log_std - 0.5 * jnp.log(2.0 * jnp.pi)).sum(-1)
    return mu, std, logp


if __name__ == "__main__":
    state_size, action_size, hidden_nodes, batch = 16, 8, 32, 8

    key = jax.random.PRNGKey(0)
    k_p, k_s, k_a = jax.random.split(key, 3)

    params = init_params(k_p, state_size, action_size, hidden_nodes)
    states = jax.random.normal(k_s, (batch, state_size), jnp.float32)
    act = jax.random.normal(k_a, (batch, action_size), jnp.float32)

    mu, std, logp_a = actor_forward(states, params, act)
    jax.block_until_ready((mu, std, logp_a))

    mu_ref, std_ref, logp_ref = _reference(states, act, params)
    assert mu.shape == (batch, action_size)
    assert std.shape == (action_size,)
    assert logp_a.shape == (batch,)
    assert jnp.allclose(mu, mu_ref, atol=1e-5)
    assert jnp.allclose(std, std_ref, atol=1e-6)
    assert jnp.allclose(logp_a, logp_ref, atol=1e-4)

    # forward(states) with no actions -> logp_a is None (module's optional act);
    # uses the specialized mu-only kernel (no act DMA, no logp math).
    mu2, std2, logp_none = actor_forward(states, params)
    jax.block_until_ready((mu2, std2))
    assert logp_none is None
    assert mu2.shape == (batch, action_size)
    assert jnp.allclose(mu2, mu_ref, atol=1e-5)
    assert jnp.allclose(std2, std_ref, atol=1e-6)

    print("KERNEL_OK")
</pallas_src>

<mosaic_0001>
module attributes {stable_mosaic.version = 11 : i64} {
  func.func @_actor_logp_kernel(%arg0: i32, %arg1: memref<128x16xf32, #tpu.memory_space<vmem>>, %arg2: memref<128x8xf32, #tpu.memory_space<vmem>>, %arg3: memref<8x8xf32, #tpu.memory_space<vmem>>, %arg4: memref<32x16xf32, #tpu.memory_space<vmem>>, %arg5: memref<32x1xf32, #tpu.memory_space<vmem>>, %arg6: memref<32x32xf32, #tpu.memory_space<vmem>>, %arg7: memref<32x1xf32, #tpu.memory_space<vmem>>, %arg8: memref<8x32xf32, #tpu.memory_space<vmem>>, %arg9: memref<8x1xf32, #tpu.memory_space<vmem>>, %arg10: memref<8x1xf32, #tpu.memory_space<vmem>>, %arg11: memref<8x1xf32, #tpu.memory_space<vmem>>, %arg12: memref<8x128xf32, #tpu.memory_space<vmem>>, %arg13: memref<1x128xf32, #tpu.memory_space<vmem>>) attributes {dimension_semantics = [#tpu.dimension_semantics<parallel>], iteration_bounds = array<i64: 1>, scalar_prefetch = 0 : i64, scratch_operands = 0 : i64, tpu.core_type = #tpu.core_type<tc>, window_params = [{transform_indices = @transform_0, window_bounds = array<i64: 128, 16>}, {transform_indices = @transform_1, window_bounds = array<i64: 128, 8>}, {pipeline_mode = #tpu.pipeline_mode<synchronous>, transform_indices = @transform_2, window_bounds = array<i64: 8, 8>}, {pipeline_mode = #tpu.pipeline_mode<synchronous>, transform_indices = @transform_3, window_bounds = array<i64: 32, 16>}, {pipeline_mode = #tpu.pipeline_mode<synchronous>, transform_indices = @transform_4, window_bounds = array<i64: 32, 1>}, {pipeline_mode = #tpu.pipeline_mode<synchronous>, transform_indices = @transform_5, window_bounds = array<i64: 32, 32>}, {pipeline_mode = #tpu.pipeline_mode<synchronous>, transform_indices = @transform_6, window_bounds = array<i64: 32, 1>}, {pipeline_mode = #tpu.pipeline_mode<synchronous>, transform_indices = @transform_7, window_bounds = array<i64: 8, 32>}, {pipeline_mode = #tpu.pipeline_mode<synchronous>, transform_indices = @transform_8, window_bounds = array<i64: 8, 1>}, {pipeline_mode = #tpu.pipeline_mode<synchronous>, transform_indices = @transform_9, window_bounds = array<i64: 8, 1>}, {pipeline_mode = #tpu.pipeline_mode<synchronous>, transform_indices = @transform_10, window_bounds = array<i64: 8, 1>}, {transform_indices = @transform_11, window_bounds = array<i64: 8, 128>}, {transform_indices = @transform_12, window_bounds = array<i64: 1, 128>}]} {
    %c0 = arith.constant 0 : index
    %c0_0 = arith.constant 0 : index
    %0 = vector.load %arg1[%c0, %c0_0] : memref<128x16xf32, #tpu.memory_space<vmem>>, vector<128x16xf32>
    %c0_1 = arith.constant 0 : index
    %c0_2 = arith.constant 0 : index
    %1 = vector.load %arg4[%c0_1, %c0_2] : memref<32x16xf32, #tpu.memory_space<vmem>>, vector<32x16xf32>
    %cst = arith.constant dense<0.000000e+00> : vector<32x128xf32>
    %2 = tpu.matmul %1, %0, %cst {dimension_numbers = #tpu.dot_dimension_numbers<[1], [1], [0], [0], [0, 0, 1, 0], [], []>} : vector<32x16xf32>, vector<128x16xf32>, vector<32x128xf32> -> vector<32x128xf32>
    %c0_3 = arith.constant 0 : index
    %c0_4 = arith.constant 0 : index
    %3 = vector.load %arg5[%c0_3, %c0_4] : memref<32x1xf32, #tpu.memory_space<vmem>>, vector<32x1xf32>
    %4 = vector.broadcast %3 : vector<32x1xf32> to vector<32x128xf32>
    %5 = arith.addf %2, %4 : vector<32x128xf32>
    %6 = math.tanh %5 : vector<32x128xf32>
    %c0_5 = arith.constant 0 : index
    %c0_6 = arith.constant 0 : index
    %7 = vector.load %arg6[%c0_5, %c0_6] : memref<32x32xf32, #tpu.memory_space<vmem>>, vector<32x32xf32>
    %cst_7 = arith.constant dense<0.000000e+00> : vector<32x128xf32>
    %8 = tpu.matmul %7, %6, %cst_7 {dimension_numbers = #tpu.dot_dimension_numbers<[1], [0], [0], [1], [0, 0, 1, 1], [], []>} : vector<32x32xf32>, vector<32x128xf32>, vector<32x128xf32> -> vector<32x128xf32>
    %c0_8 = arith.constant 0 : index
    %c0_9 = arith.constant 0 : index
    %9 = vector.load %arg7[%c0_8, %c0_9] : memref<32x1xf32, #tpu.memory_space<vmem>>, vector<32x1xf32>
    %10 = vector.broadcast %9 : vector<32x1xf32> to vector<32x128xf32>
    %11 = arith.addf %8, %10 : vector<32x128xf32>
    %12 = math.tanh %11 : vector<32x128xf32>
    %c0_10 = arith.constant 0 : index
    %c0_11 = arith.constant 0 : index
    %13 = vector.load %arg8[%c0_10, %c0_11] : memref<8x32xf32, #tpu.memory_space<vmem>>, vector<8x32xf32>
    %cst_12 = arith.constant dense<0.000000e+00> : vector<8x128xf32>
    %14 = tpu.matmul %13, %12, %cst_12 {dimension_numbers = #tpu.dot_dimension_numbers<[1], [0], [0], [1], [0, 0, 1, 1], [], []>} : vector<8x32xf32>, vector<32x128xf32>, vector<8x128xf32> -> vector<8x128xf32>
    %c0_13 = arith.constant 0 : index
    %c0_14 = arith.constant 0 : index
    %15 = vector.load %arg9[%c0_13, %c0_14] : memref<8x1xf32, #tpu.memory_space<vmem>>, vector<8x1xf32>
    %16 = vector.broadcast %15 : vector<8x1xf32> to vector<8x128xf32>
    %17 = arith.addf %14, %16 : vector<8x128xf32>
    %c0_15 = arith.constant 0 : index
    %c0_16 = arith.constant 0 : index
    %18 = vector.load %arg12[%c0_15, %c0_16] : memref<8x128xf32, #tpu.memory_space<vmem>>, vector<8x128xf32>
    tpu.vector_store %arg12[%c0_15, %c0_16], %17 {strides = array<i32>} : memref<8x128xf32, #tpu.memory_space<vmem>>, vector<8x128xf32>,
    %c0_17 = arith.constant 0 : index
    %c0_18 = arith.constant 0 : index
    %19 = vector.load %arg3[%c0_17, %c0_18] : memref<8x8xf32, #tpu.memory_space<vmem>>, vector<8x8xf32>
    %c0_19 = arith.constant 0 : index
    %c0_20 = arith.constant 0 : index
    %20 = vector.load %arg2[%c0_19, %c0_20] : memref<128x8xf32, #tpu.memory_space<vmem>>, vector<128x8xf32>
    %cst_21 = arith.constant dense<0.000000e+00> : vector<8x128xf32>
    %21 = tpu.matmul %19, %20, %cst_21 {dimension_numbers = #tpu.dot_dimension_numbers<[1], [1], [0], [0], [0, 0, 1, 0], [], []>} : vector<8x8xf32>, vector<128x8xf32>, vector<8x128xf32> -> vector<8x128xf32>
    %22 = arith.subf %21, %17 : vector<8x128xf32>
    %c0_22 = arith.constant 0 : index
    %c0_23 = arith.constant 0 : index
    %23 = vector.load %arg10[%c0_22, %c0_23] : memref<8x1xf32, #tpu.memory_space<vmem>>, vector<8x1xf32>
    %24 = vector.broadcast %23 : vector<8x1xf32> to vector<8x128xf32>
    %25 = arith.mulf %22, %24 : vector<8x128xf32>
    %c0_24 = arith.constant 0 : index
    %c0_25 = arith.constant 0 : index
    %26 = vector.load %arg11[%c0_24, %c0_25] : memref<8x1xf32, #tpu.memory_space<vmem>>, vector<8x1xf32>
    %27 = arith.mulf %25, %25 : vector<8x128xf32>
    %cst_26 = arith.constant 5.000000e-01 : f32
    %28 = vector.broadcast %cst_26 : f32 to vector<8x128xf32>
    %29 = arith.mulf %28, %27 : vector<8x128xf32>
    %30 = vector.broadcast %26 : vector<8x1xf32> to vector<8x128xf32>
    %31 = arith.subf %30, %29 : vector<8x128xf32>
    %cst_27 = arith.constant dense<0.000000e+00> : vector<128xf32>
    %32 = vector.multi_reduction <add>, %31, %cst_27 [0] : vector<8x128xf32> to vector<128xf32>
    %33 = vector.shape_cast %32 : vector<128xf32> to vector<1x128xf32>
    %c0_28 = arith.constant 0 : index
    %c0_29 = arith.constant 0 : index
    %34 = vector.load %arg13[%c0_28, %c0_29] : memref<1x128xf32, #tpu.memory_space<vmem>>, vector<1x128xf32>
    tpu.vector_store %arg13[%c0_28, %c0_29], %33 {strides = array<i32>} : memref<1x128xf32, #tpu.memory_space<vmem>>, vector<1x128xf32>,
    return
  }
  func.func @transform_0(%arg0: i32) -> (i32, i32) {
    %c0_i32 = arith.constant 0 : i32
    %c0_i32_0 = arith.constant 0 : i32
    return %arg0, %c0_i32 : i32, i32
  }
  func.func @transform_1(%arg0: i32) -> (i32, i32) {
    %c0_i32 = arith.constant 0 : i32
    %c0_i32_0 = arith.constant 0 : i32
    return %arg0, %c0_i32 : i32, i32
  }
  func.func @transform_2(%arg0: i32) -> (i32, i32) {
    %c0_i32 = arith.constant 0 : i32
    %c0_i32_0 = arith.constant 0 : i32
    %c0_i32_1 = arith.constant 0 : i32
    return %c0_i32, %c0_i32_0 : i32, i32
  }
  func.func @transform_3(%arg0: i32) -> (i32, i32) {
    %c0_i32 = arith.constant 0 : i32
    %c0_i32_0 = arith.constant 0 : i32
    %c0_i32_1 = arith.constant 0 : i32
    return %c0_i32, %c0_i32_0 : i32, i32
  }
  func.func @transform_4(%arg0: i32) -> (i32, i32) {
    %c0_i32 = arith.constant 0 : i32
    %c0_i32_0 = arith.constant 0 : i32
    %c0_i32_1 = arith.constant 0 : i32
    return %c0_i32, %c0_i32_0 : i32, i32
  }
  func.func @transform_5(%arg0: i32) -> (i32, i32) {
    %c0_i32 = arith.constant 0 : i32
    %c0_i32_0 = arith.constant 0 : i32
    %c0_i32_1 = arith.constant 0 : i32
    return %c0_i32, %c0_i32_0 : i32, i32
  }
  func.func @transform_6(%arg0: i32) -> (i32, i32) {
    %c0_i32 = arith.constant 0 : i32
    %c0_i32_0 = arith.constant 0 : i32
    %c0_i32_1 = arith.constant 0 : i32
    return %c0_i32, %c0_i32_0 : i32, i32
  }
  func.func @transform_7(%arg0: i32) -> (i32, i32) {
    %c0_i32 = arith.constant 0 : i32
    %c0_i32_0 = arith.constant 0 : i32
    %c0_i32_1 = arith.constant 0 : i32
    return %c0_i32, %c0_i32_0 : i32, i32
  }
  func.func @transform_8(%arg0: i32) -> (i32, i32) {
    %c0_i32 = arith.constant 0 : i32
    %c0_i32_0 = arith.constant 0 : i32
    %c0_i32_1 = arith.constant 0 : i32
    return %c0_i32, %c0_i32_0 : i32, i32
  }
  func.func @transform_9(%arg0: i32) -> (i32, i32) {
    %c0_i32 = arith.constant 0 : i32
    %c0_i32_0 = arith.constant 0 : i32
    %c0_i32_1 = arith.constant 0 : i32
    return %c0_i32, %c0_i32_0 : i32, i32
  }
  func.func @transform_10(%arg0: i32) -> (i32, i32) {
    %c0_i32 = arith.constant 0 : i32
    %c0_i32_0 = arith.constant 0 : i32
    %c0_i32_1 = arith.constant 0 : i32
    return %c0_i32, %c0_i32_0 : i32, i32
  }
  func.func @transform_11(%arg0: i32) -> (i32, i32) {
    %c0_i32 = arith.constant 0 : i32
    %c0_i32_0 = arith.constant 0 : i32
    return %c0_i32, %arg0 : i32, i32
  }
  func.func @transform_12(%arg0: i32) -> (i32, i32) {
    %c0_i32 = arith.constant 0 : i32
    %c0_i32_0 = arith.constant 0 : i32
    return %c0_i32, %arg0 : i32, i32
  }
}

</mosaic_0001>

<llo_original>
// kernel: _actor_forward_logp.1
$region0: #{_actor_forward_logp.1}
  #allocation0 [shape = 'u32[]', space=smem, size = 0x4, offset = 0x4, fixed_abs, tag = 'smem constant byte address 0x4 - core index']
  #allocation1 [shape = 'u32[144,128]{1,0:T(1,128)}', space=vmem, size = 0x12000, scoped, tag = 'internal scratch']
  %s0 = inlined_call_operand.vmem [shape: f32[128,16], index: 0, kind: input, shape index: {}]
  %s1 = inlined_call_operand.vmem [shape: f32[128,8], index: 1, kind: input, shape index: {}]
  %s2 = inlined_call_operand.vmem [shape: f32[8,8], index: 2, kind: input, shape index: {}]
  %s3 = inlined_call_operand.vmem [shape: f32[32,16], index: 3, kind: input, shape index: {}]
  %s4 = inlined_call_operand.vmem [shape: f32[32,1], index: 4, kind: input, shape index: {}]
  %s5 = inlined_call_operand.vmem [shape: f32[32,32], index: 5, kind: input, shape index: {}]
  %s6 = inlined_call_operand.vmem [shape: f32[32,1], index: 6, kind: input, shape index: {}]
  %s7 = inlined_call_operand.vmem [shape: f32[8,32], index: 7, kind: input, shape index: {}]
  %s8 = inlined_call_operand.vmem [shape: f32[8,1], index: 8, kind: input, shape index: {}]
  %s9 = inlined_call_operand.vmem [shape: f32[8,1], index: 9, kind: input, shape index: {}]
  %s10 = inlined_call_operand.vmem [shape: f32[8,1], index: 10, kind: input, shape index: {}]
  %s11 = inlined_call_operand.vmem [shape: f32[8,128], index: 11, kind: output, shape index: {0}]
  %s12 = inlined_call_operand.vmem [shape: f32[1,128], index: 12, kind: output, shape index: {1}]
  %13 = xla_tuple %s11, %s12
  %s14 = sld [smem:[#allocation0]]
  $region62: #{_actor_forward_logp.1} parent=0
    _
  %s16 = ssub.s32 1, %s14
  %s17 = scalar_select 0, %s16, %s14
  // Predicated region
  $region2: #{_actor_forward_logp.1} parent=0 // pred_check
    _
  $region3: #{_actor_forward_logp.1} parent=0 // pred_check_branch
    %19 = sbr.rel (0) target = $region5
  $region4: #{_actor_forward_logp.1} parent=0 // pred_region
    _
  $region5: #{_actor_forward_logp.1} parent=0 // pred_fallthru
    _
  // Predicated region
  $region6: #{_actor_forward_logp.1} parent=0 // pred_check
    _
  $region7: #{_actor_forward_logp.1} parent=0 // pred_check_branch
    %21 = sbr.rel (0) target = $region9
  $region8: #{_actor_forward_logp.1} parent=0 // pred_region
    _
  $region9: #{_actor_forward_logp.1} parent=0 // pred_fallthru
    _
  // Predicated region
  $region10: #{_actor_forward_logp.1} parent=0 // pred_check
    _
  $region11: #{_actor_forward_logp.1} parent=0 // pred_check_branch
    %23 = sbr.rel (0) target = $region13
  $region12: #{_actor_forward_logp.1} parent=0 // pred_region
    _
  $region13: #{_actor_forward_logp.1} parent=0 // pred_fallthru
    _
  // Predicated region
  $region14: #{_actor_forward_logp.1} parent=0 // pred_check
    _
  $region15: #{_actor_forward_logp.1} parent=0 // pred_check_branch
    %25 = sbr.rel (0) target = $region17
  $region16: #{_actor_forward_logp.1} parent=0 // pred_region
    _
  $region17: #{_actor_forward_logp.1} parent=0 // pred_fallthru
    _
  // Predicated region
  $region18: #{_actor_forward_logp.1} parent=0 // pred_check
    _
  $region19: #{_actor_forward_logp.1} parent=0 // pred_check_branch
    %27 = sbr.rel (0) target = $region21
  $region20: #{_actor_forward_logp.1} parent=0 // pred_region
    _
  $region21: #{_actor_forward_logp.1} parent=0 // pred_fallthru
    _
  // Predicated region
  $region22: #{_actor_forward_logp.1} parent=0 // pred_check
    _
  $region23: #{_actor_forward_logp.1} parent=0 // pred_check_branch
    %29 = sbr.rel (0) target = $region25
  $region24: #{_actor_forward_logp.1} parent=0 // pred_region
    _
  $region25: #{_actor_forward_logp.1} parent=0 // pred_fallthru
    _
  // Predicated region
  $region26: #{_actor_forward_logp.1} parent=0 // pred_check
    _
  $region27: #{_actor_forward_logp.1} parent=0 // pred_check_branch
    %31 = sbr.rel (0) target = $region29
  $region28: #{_actor_forward_logp.1} parent=0 // pred_region
    _
  $region29: #{_actor_forward_logp.1} parent=0 // pred_fallthru
    _
  // Predicated region
  $region30: #{_actor_forward_logp.1} parent=0 // pred_check
    _
  $region31: #{_actor_forward_logp.1} parent=0 // pred_check_branch
    %33 = sbr.rel (0) target = $region33
  $region32: #{_actor_forward_logp.1} parent=0 // pred_region
    _
  $region33: #{_actor_forward_logp.1} parent=0 // pred_fallthru
    _
  // Predicated region
  $region34: #{_actor_forward_logp.1} parent=0 // pred_check
    _
  $region35: #{_actor_forward_logp.1} parent=0 // pred_check_branch
    %35 = sbr.rel (0) target = $region37
  $region36: #{_actor_forward_logp.1} parent=0 // pred_region
    _
  $region37: #{_actor_forward_logp.1} parent=0 // pred_fallthru
    _
  // Predicated region
  $region38: #{_actor_forward_logp.1} parent=0 // pred_check
    _
  $region39: #{_actor_forward_logp.1} parent=0 // pred_check_branch
    %37 = sbr.rel (0) target = $region41
  $region40: #{_actor_forward_logp.1} parent=0 // pred_region
    _
  $region41: #{_actor_forward_logp.1} parent=0 // pred_fallthru
    _
  // Predicated region
  $region42: #{_actor_forward_logp.1} parent=0 // pred_check
    _
  $region43: #{_actor_forward_logp.1} parent=0 // pred_check_branch
    %39 = sbr.rel (0) target = $region45
  $region44: #{_actor_forward_logp.1} parent=0 // pred_region
    _
  $region45: #{_actor_forward_logp.1} parent=0 // pred_fallthru
    _
  %v40 = vld [vmem:[%s0] sm:$0xff]
  %v41 = vld [vmem:[%s0 + $0x8] sm:$0xff]
  %v42 = vld [vmem:[%s0 + $0x10] sm:$0xff]
  %v43 = vld [vmem:[%s0 + $0x18] sm:$0xff]
  %v44 = vld [vmem:[%s0 + $0x20] sm:$0xff]
  %v45 = vld [vmem:[%s0 + $0x28] sm:$0xff]
  %v46 = vld [vmem:[%s0 + $0x30] sm:$0xff]
  %v47 = vld [vmem:[%s0 + $0x38] sm:$0xff]
  %v48 = vld [vmem:[%s0 + $0x40] sm:$0xff]
  %v49 = vld [vmem:[%s0 + $0x48] sm:$0xff]
  %v50 = vld [vmem:[%s0 + $0x50] sm:$0xff]
  %v51 = vld [vmem:[%s0 + $0x58] sm:$0xff]
  %v52 = vld [vmem:[%s0 + $0x60] sm:$0xff]
  %v53 = vld [vmem:[%s0 + $0x68] sm:$0xff]
  %v54 = vld [vmem:[%s0 + $0x70] sm:$0xff]
  %v55 = vld [vmem:[%s0 + $0x78] sm:$0xff]
  %v56 = vld [vmem:[%s3] sm:$0xff]
  %v57 = vld [vmem:[%s3 + $0x8] sm:$0xff]
  %v58 = vld [vmem:[%s3 + $0x10] sm:$0xff]
  %v59 = vld [vmem:[%s3 + $0x18] sm:$0xff]
  %v60 = vld [vmem:[%s4] sm:$0xff]
  %v61 = vld [vmem:[%s4 + $0x8] sm:$0xff]
  %v62 = vld [vmem:[%s4 + $0x10] sm:$0xff]
  %v63 = vld [vmem:[%s4 + $0x18] sm:$0xff]
  %65 = vset.pattern.permute.xlu0 0
  %66 = vperm.xlu0 %65, %v60
  %v67 = vpop.permute.xlu0 %66
  %70 = vset.pattern.permute.xlu0 0
  %71 = vperm.xlu0 %70, %v61
  %v72 = vpop.permute.xlu0 %71
  %75 = vset.pattern.permute.xlu0 0
  %76 = vperm.xlu0 %75, %v62
  %v77 = vpop.permute.xlu0 %76
  %80 = vset.pattern.permute.xlu0 0
  %81 = vperm.xlu0 %80, %v63
  %v82 = vpop.permute.xlu0 %81
  %vm84 = vcmask 130048
  %v86 = vsel %vm84, %v56, 0
  %v89 = vsel %vm84, %v57, 0
  %v92 = vsel %vm84, %v58, 0
  %v95 = vsel %vm84, %v59, 0
  %v98 = vsel %vm84, %v40, 0
  %v101 = vsel %vm84, %v41, 0
  %v104 = vsel %vm84, %v42, 0
  %v107 = vsel %vm84, %v43, 0
  %v110 = vsel %vm84, %v44, 0
  %v113 = vsel %vm84, %v45, 0
  %v116 = vsel %vm84, %v46, 0
  %v119 = vsel %vm84, %v47, 0
  %v122 = vsel %vm84, %v48, 0
  %v125 = vsel %vm84, %v49, 0
  %v128 = vsel %vm84, %v50, 0
  %v131 = vsel %vm84, %v51, 0
  %v134 = vsel %vm84, %v52, 0
  %v137 = vsel %vm84, %v53, 0
  %v140 = vsel %vm84, %v54, 0
  %v143 = vsel %vm84, %v55, 0
  %145 = vmatprep.subr.mxu0 0.0
  %146 = vmatpush1.xpose.msra.mxu0 %v143
  %147 = vmatprep.subr.mxu0 0.0
  %148 = vmatpush1.xpose.msra.mxu0 %v140
  %149 = vmatprep.subr.mxu0 0.0
  %150 = vmatpush1.xpose.msra.mxu0 %v137
  %151 = vmatprep.subr.mxu0 0.0
  %152 = vmatpush1.xpose.msra.mxu0 %v134
  %153 = vmatprep.subr.mxu0 0.0
  %154 = vmatpush1.xpose.msra.mxu0 %v131
  %155 = vmatprep.subr.mxu0 0.0
  %156 = vmatpush1.xpose.msra.mxu0 %v128
  %157 = vmatprep.subr.mxu0 0.0
  %158 = vmatpush1.xpose.msra.mxu0 %v125
  %159 = vmatprep.subr.mxu0 0.0
  %160 = vmatpush1.xpose.msra.mxu0 %v122
  %161 = vmatprep.subr.mxu0 0.0
  %162 = vmatpush1.xpose.msra.mxu0 %v119
  %163 = vmatprep.subr.mxu0 0.0
  %164 = vmatpush1.xpose.msra.mxu0 %v116
  %165 = vmatprep.subr.mxu0 0.0
  %166 = vmatpush1.xpose.msra.mxu0 %v113
  %167 = vmatprep.subr.mxu0 0.0
  %168 = vmatpush1.xpose.msra.mxu0 %v110
  %169 = vmatprep.subr.mxu0 0.0
  %170 = vmatpush1.xpose.msra.mxu0 %v107
  %171 = vmatprep.subr.mxu0 0.0
  %172 = vmatpush1.xpose.msra.mxu0 %v104
  %173 = vmatprep.subr.mxu0 0.0
  %174 = vmatpush1.xpose.msra.mxu0 %v101
  %175 = vmatprep.subr.mxu0 0.0
  %176 = vmatpush1.xpose.msra.mxu0 %v98
  %177 = vmatprep.subr.mxu0 0.0
  %178 = vmatpush2.xpose.msra.mxu0 0.0
  %179 = vmatprep.subr.mxu0 0.0
  %180 = vmatpush2.xpose.msra.mxu0 0.0
  %181 = vmatprep.subr.mxu0 0.0
  %182 = vmatpush2.xpose.msra.mxu0 0.0
  %183 = vmatprep.subr.mxu0 0.0
  %184 = vmatpush2.xpose.msra.mxu0 0.0
  %185 = vmatprep.subr.mxu0 0.0
  %186 = vmatpush2.xpose.msra.mxu0 0.0
  %187 = vmatprep.subr.mxu0 0.0
  %188 = vmatpush2.xpose.msra.mxu0 0.0
  %189 = vmatprep.subr.mxu0 0.0
  %190 = vmatpush2.xpose.msra.mxu0 0.0
  %191 = vmatprep.subr.mxu0 0.0
  %192 = vmatpush2.xpose.msra.mxu0 0.0
  %193 = vmatprep.subr.mxu0 0.0
  %194 = vmatpush2.xpose.msra.mxu0 0.0
  %195 = vmatprep.subr.mxu0 0.0
  %196 = vmatpush2.xpose.msra.mxu0 0.0
  %197 = vmatprep.subr.mxu0 0.0
  %198 = vmatpush2.xpose.msra.mxu0 0.0
  %199 = vmatprep.subr.mxu0 0.0
  %200 = vmatpush2.xpose.msra.mxu0 0.0
  %201 = vmatprep.subr.mxu0 0.0
  %202 = vmatpush2.xpose.msra.mxu0 0.0
  %203 = vmatprep.subr.mxu0 0.0
  %204 = vmatpush2.xpose.msra.mxu0 0.0
  %205 = vmatprep.subr.mxu0 0.0
  %206 = vmatpush2.xpose.msra.mxu0 0.0
  %207 = vmatprep.subr.mxu0 0.0
  %208 = vmatpush2.xpose.msra.mxu0 0.0
  %209 = vmatprep.mubr.f32.mxu0 0.0
  %210 = vmatmul.mubr.f32.gmra.mxu0 %v86
  %v211 = vpop.f32.mrf.mxu0
  %v212 = vadd.f32 %v67, %v211
  %v213 = vpop.f32.mrf.mxu0
  %214 = vmatprep.mubr.f32.mxu0 0.0
  %215 = vmatmul.mubr.f32.gmra.mxu0 %v89
  %v216 = vpop.f32.mrf.mxu0
  %v217 = vadd.f32 %v72, %v216
  %v218 = vpop.f32.mrf.mxu0
  %219 = vmatprep.mubr.f32.mxu0 0.0
  %220 = vmatmul.mubr.f32.gmra.mxu0 %v92
  %v221 = vpop.f32.mrf.mxu0
  %v222 = vadd.f32 %v77, %v221
  %v223 = vpop.f32.mrf.mxu0
  %224 = vmatprep.mubr.f32.mxu0 0.0
  %225 = vmatmul.mubr.f32.gmra.mxu0 %v95
  %v226 = vpop.f32.mrf.mxu0
  %v227 = vadd.f32 %v82, %v226
  %v228 = vpop.f32.mrf.mxu0
  %229 = vdwg.mxu0
  %v230 = vtanh.pop %v212
  %v231 = vtanh.pop %v217
  %v232 = vtanh.pop %v222
  %v233 = vtanh.pop %v227
  %v234 = vld [vmem:[%s5] sm:$0xff]
  %v235 = vld [vmem:[%s5 + $0x8] sm:$0xff]
  %v236 = vld [vmem:[%s5 + $0x10] sm:$0xff]
  %v237 = vld [vmem:[%s5 + $0x18] sm:$0xff]
  %v238 = vld [vmem:[%s6] sm:$0xff]
  %v239 = vld [vmem:[%s6 + $0x8] sm:$0xff]
  %v240 = vld [vmem:[%s6 + $0x10] sm:$0xff]
  %v241 = vld [vmem:[%s6 + $0x18] sm:$0xff]
  %243 = vset.pattern.permute.xlu0 0
  %244 = vperm.xlu0 %243, %v238
  %v245 = vpop.permute.xlu0 %244
  %248 = vset.pattern.permute.xlu0 0
  %249 = vperm.xlu0 %248, %v239
  %v250 = vpop.permute.xlu0 %249
  %253 = vset.pattern.permute.xlu0 0
  %254 = vperm.xlu0 %253, %v240
  %v255 = vpop.permute.xlu0 %254
  %258 = vset.pattern.permute.xlu0 0
  %259 = vperm.xlu0 %258, %v241
  %v260 = vpop.permute.xlu0 %259
  %vm262 = vcmask 261120
  %v264 = vsel %vm262, %v234, 0
  %v267 = vsel %vm262, %v235, 0
  %v270 = vsel %vm262, %v236, 0
  %v273 = vsel %vm262, %v237, 0
  %275 = vmatprep.subr.mxu0 0.0
  %276 = vmatpush1.msra.mxu0 0.0
  %277 = vmatprep.subr.mxu0 0.0
  %278 = vmatpush1.msra.mxu0 0.0
  %279 = vmatprep.subr.mxu0 0.0
  %280 = vmatpush1.msra.mxu0 0.0
  %281 = vmatprep.subr.mxu0 0.0
  %282 = vmatpush1.msra.mxu0 0.0
  %283 = vmatprep.subr.mxu0 0.0
  %284 = vmatpush1.msra.mxu0 0.0
  %285 = vmatprep.subr.mxu0 0.0
  %286 = vmatpush1.msra.mxu0 0.0
  %287 = vmatprep.subr.mxu0 0.0
  %288 = vmatpush1.msra.mxu0 0.0
  %289 = vmatprep.subr.mxu0 0.0
  %290 = vmatpush1.msra.mxu0 0.0
  %291 = vmatprep.subr.mxu0 0.0
  %292 = vmatpush1.msra.mxu0 0.0
  %293 = vmatprep.subr.mxu0 0.0
  %294 = vmatpush1.msra.mxu0 0.0
  %295 = vmatprep.subr.mxu0 0.0
  %296 = vmatpush1.msra.mxu0 0.0
  %297 = vmatprep.subr.mxu0 0.0
  %298 = vmatpush1.msra.mxu0 0.0
  %299 = vmatprep.subr.mxu0 0.0
  %300 = vmatpush1.msra.mxu0 %v233
  %301 = vmatprep.subr.mxu0 0.0
  %302 = vmatpush1.msra.mxu0 %v232
  %303 = vmatprep.subr.mxu0 0.0
  %304 = vmatpush1.msra.mxu0 %v231
  %305 = vmatprep.subr.mxu0 0.0
  %306 = vmatpush1.msra.mxu0 %v230
  %307 = vmatprep.subr.mxu0 0.0
  %308 = vmatpush2.msra.mxu0 0.0
  %309 = vmatprep.subr.mxu0 0.0
  %310 = vmatpush2.msra.mxu0 0.0
  %311 = vmatprep.subr.mxu0 0.0
  %312 = vmatpush2.msra.mxu0 0.0
  %313 = vmatprep.subr.mxu0 0.0
  %314 = vmatpush2.msra.mxu0 0.0
  %315 = vmatprep.subr.mxu0 0.0
  %316 = vmatpush2.msra.mxu0 0.0
  %317 = vmatprep.subr.mxu0 0.0
  %318 = vmatpush2.msra.mxu0 0.0
  %319 = vmatprep.subr.mxu0 0.0
  %320 = vmatpush2.msra.mxu0 0.0
  %321 = vmatprep.subr.mxu0 0.0
  %322 = vmatpush2.msra.mxu0 0.0
  %323 = vmatprep.subr.mxu0 0.0
  %324 = vmatpush2.msra.mxu0 0.0
  %325 = vmatprep.subr.mxu0 0.0
  %326 = vmatpush2.msra.mxu0 0.0
  %327 = vmatprep.subr.mxu0 0.0
  %328 = vmatpush2.msra.mxu0 0.0
  %329 = vmatprep.subr.mxu0 0.0
  %330 = vmatpush2.msra.mxu0 0.0
  %331 = vmatprep.subr.mxu0 0.0
  %332 = vmatpush2.msra.mxu0 0.0
  %333 = vmatprep.subr.mxu0 0.0
  %334 = vmatpush2.msra.mxu0 0.0
  %335 = vmatprep.subr.mxu0 0.0
  %336 = vmatpush2.msra.mxu0 0.0
  %337 = vmatprep.subr.mxu0 0.0
  %338 = vmatpush2.msra.mxu0 0.0
  %339 = vmatprep.mubr.f32.mxu0 0.0
  %340 = vmatmul.mubr.f32.gmra.mxu0 %v264
  %v341 = vpop.f32.mrf.mxu0
  %v342 = vadd.f32 %v245, %v341
  %v343 = vpop.f32.mrf.mxu0
  %344 = vmatprep.mubr.f32.mxu0 0.0
  %345 = vmatmul.mubr.f32.gmra.mxu0 %v267
  %v346 = vpop.f32.mrf.mxu0
  %v347 = vadd.f32 %v250, %v346
  %v348 = vpop.f32.mrf.mxu0
  %349 = vmatprep.mubr.f32.mxu0 0.0
  %350 = vmatmul.mubr.f32.gmra.mxu0 %v270
  %v351 = vpop.f32.mrf.mxu0
  %v352 = vadd.f32 %v255, %v351
  %v353 = vpop.f32.mrf.mxu0
  %354 = vmatprep.mubr.f32.mxu0 0.0
  %355 = vmatmul.mubr.f32.gmra.mxu0 %v273
  %v356 = vpop.f32.mrf.mxu0
  %v357 = vadd.f32 %v260, %v356
  %v358 = vpop.f32.mrf.mxu0
  %359 = vdwg.mxu0
  %v360 = vtanh.pop %v342
  %v361 = vtanh.pop %v347
  %v362 = vtanh.pop %v352
  %v363 = vtanh.pop %v357
  %v364 = vld [vmem:[%s7] sm:$0xff]
  %v365 = vld [vmem:[%s8] sm:$0xff]
  %367 = vset.pattern.permute.xlu0 0
  %368 = vperm.xlu0 %367, %v365
  %v369 = vpop.permute.xlu0 %368
  %v372 = vsel %vm262, %v364, 0
  %374 = vmatprep.subr.mxu0 0.0
  %375 = vmatpush1.msra.mxu0 0.0
  %376 = vmatprep.subr.mxu0 0.0
  %377 = vmatpush1.msra.mxu0 0.0
  %378 = vmatprep.subr.mxu0 0.0
  %379 = vmatpush1.msra.mxu0 0.0
  %380 = vmatprep.subr.mxu0 0.0
  %381 = vmatpush1.msra.mxu0 0.0
  %382 = vmatprep.subr.mxu0 0.0
  %383 = vmatpush1.msra.mxu0 0.0
  %384 = vmatprep.subr.mxu0 0.0
  %385 = vmatpush1.msra.mxu0 0.0
  %386 = vmatprep.subr.mxu0 0.0
  %387 = vmatpush1.msra.mxu0 0.0
  %388 = vmatprep.subr.mxu0 0.0
  %389 = vmatpush1.msra.mxu0 0.0
  %390 = vmatprep.subr.mxu0 0.0
  %391 = vmatpush1.msra.mxu0 0.0
  %392 = vmatprep.subr.mxu0 0.0
  %393 = vmatpush1.msra.mxu0 0.0
  %394 = vmatprep.subr.mxu0 0.0
  %395 = vmatpush1.msra.mxu0 0.0
  %396 = vmatprep.subr.mxu0 0.0
  %397 = vmatpush1.msra.mxu0 0.0
  %398 = vmatprep.subr.mxu0 0.0
  %399 = vmatpush1.msra.mxu0 %v363
  %400 = vmatprep.subr.mxu0 0.0
  %401 = vmatpush1.msra.mxu0 %v362
  %402 = vmatprep.subr.mxu0 0.0
  %403 = vmatpush1.msra.mxu0 %v361
  %404 = vmatprep.subr.mxu0 0.0
  %405 = vmatpush1.msra.mxu0 %v360
  %406 = vmatprep.subr.mxu0 0.0
  %407 = vmatpush2.msra.mxu0 0.0
  %408 = vmatprep.subr.mxu0 0.0
  %409 = vmatpush2.msra.mxu0 0.0
  %410 = vmatprep.subr.mxu0 0.0
  %411 = vmatpush2.msra.mxu0 0.0
  %412 = vmatprep.subr.mxu0 0.0
  %413 = vmatpush2.msra.mxu0 0.0
  %414 = vmatprep.subr.mxu0 0.0
  %415 = vmatpush2.msra.mxu0 0.0
  %416 = vmatprep.subr.mxu0 0.0
  %417 = vmatpush2.msra.mxu0 0.0
  %418 = vmatprep.subr.mxu0 0.0
  %419 = vmatpush2.msra.mxu0 0.0
  %420 = vmatprep.subr.mxu0 0.0
  %421 = vmatpush2.msra.mxu0 0.0
  %422 = vmatprep.subr.mxu0 0.0
  %423 = vmatpush2.msra.mxu0 0.0
  %424 = vmatprep.subr.mxu0 0.0
  %425 = vmatpush2.msra.mxu0 0.0
  %426 = vmatprep.subr.mxu0 0.0
  %427 = vmatpush2.msra.mxu0 0.0
  %428 = vmatprep.subr.mxu0 0.0
  %429 = vmatpush2.msra.mxu0 0.0
  %430 = vmatprep.subr.mxu0 0.0
  %431 = vmatpush2.msra.mxu0 0.0
  %432 = vmatprep.subr.mxu0 0.0
  %433 = vmatpush2.msra.mxu0 0.0
  %434 = vmatprep.subr.mxu0 0.0
  %435 = vmatpush2.msra.mxu0 0.0
  %436 = vmatprep.subr.mxu0 0.0
  %437 = vmatpush2.msra.mxu0 0.0
  %438 = vmatprep.mubr.f32.mxu0 0.0
  %439 = vmatmul.mubr.f32.gmra.mxu0 %v372
  %v440 = vpop.f32.mrf.mxu0
  %v441 = vadd.f32 %v369, %v440
  %v442 = vpop.f32.mrf.mxu0
  %443 = vdwg.mxu0
  %444 = vst [vmem:[%s11] sm:$0xff] %v441
  %v445 = vld [vmem:[%s2] sm:$0xff]
  %v446 = vld [vmem:[%s1] sm:$0xff]
  %v447 = vld [vmem:[%s1 + $0x8] sm:$0xff]
  %v448 = vld [vmem:[%s1 + $0x10] sm:$0xff]
  %v449 = vld [vmem:[%s1 + $0x18] sm:$0xff]
  %v450 = vld [vmem:[%s1 + $0x20] sm:$0xff]
  %v451 = vld [vmem:[%s1 + $0x28] sm:$0xff]
  %v452 = vld [vmem:[%s1 + $0x30] sm:$0xff]
  %v453 = vld [vmem:[%s1 + $0x38] sm:$0xff]
  %v454 = vld [vmem:[%s1 + $0x40] sm:$0xff]
  %v455 = vld [vmem:[%s1 + $0x48] sm:$0xff]
  %v456 = vld [vmem:[%s1 + $0x50] sm:$0xff]
  %v457 = vld [vmem:[%s1 + $0x58] sm:$0xff]
  %v458 = vld [vmem:[%s1 + $0x60] sm:$0xff]
  %v459 = vld [vmem:[%s1 + $0x68] sm:$0xff]
  %v460 = vld [vmem:[%s1 + $0x70] sm:$0xff]
  %v461 = vld [vmem:[%s1 + $0x78] sm:$0xff]
  %vm462 = vcmask 64512
  %v464 = vsel %vm462, %v445, 0
  %v467 = vsel %vm462, %v446, 0
  %v470 = vsel %vm462, %v447, 0
  %v473 = vsel %vm462, %v448, 0
  %v476 = vsel %vm462, %v449, 0
  %v479 = vsel %vm462, %v450, 0
  %v482 = vsel %vm462, %v451, 0
  %v485 = vsel %vm462, %v452, 0
  %v488 = vsel %vm462, %v453, 0
  %v491 = vsel %vm462, %v454, 0
  %v494 = vsel %vm462, %v455, 0
  %v497 = vsel %vm462, %v456, 0
  %v500 = vsel %vm462, %v457, 0
  %v503 = vsel %vm462, %v458, 0
  %v506 = vsel %vm462, %v459, 0
  %v509 = vsel %vm462, %v460, 0
  %v512 = vsel %vm462, %v461, 0
  %514 = vmatprep.subr.mxu0 0.0
  %515 = vmatpush1.xpose.msra.mxu0 %v512
  %516 = vmatprep.subr.mxu0 0.0
  %517 = vmatpush1.xpose.msra.mxu0 %v509
  %518 = vmatprep.subr.mxu0 0.0
  %519 = vmatpush1.xpose.msra.mxu0 %v506
  %520 = vmatprep.subr.mxu0 0.0
  %521 = vmatpush1.xpose.msra.mxu0 %v503
  %522 = vmatprep.subr.mxu0 0.0
  %523 = vmatpush1.xpose.msra.mxu0 %v500
  %524 = vmatprep.subr.mxu0 0.0
  %525 = vmatpush1.xpose.msra.mxu0 %v497
  %526 = vmatprep.subr.mxu0 0.0
  %527 = vmatpush1.xpose.msra.mxu0 %v494
  %528 = vmatprep.subr.mxu0 0.0
  %529 = vmatpush1.xpose.msra.mxu0 %v491
  %530 = vmatprep.subr.mxu0 0.0
  %531 = vmatpush1.xpose.msra.mxu0 %v488
  %532 = vmatprep.subr.mxu0 0.0
  %533 = vmatpush1.xpose.msra.mxu0 %v485
  %534 = vmatprep.subr.mxu0 0.0
  %535 = vmatpush1.xpose.msra.mxu0 %v482
  %536 = vmatprep.subr.mxu0 0.0
  %537 = vmatpush1.xpose.msra.mxu0 %v479
  %538 = vmatprep.subr.mxu0 0.0
  %539 = vmatpush1.xpose.msra.mxu0 %v476
  %540 = vmatprep.subr.mxu0 0.0
  %541 = vmatpush1.xpose.msra.mxu0 %v473
  %542 = vmatprep.subr.mxu0 0.0
  %543 = vmatpush1.xpose.msra.mxu0 %v470
  %544 = vmatprep.subr.mxu0 0.0
  %545 = vmatpush1.xpose.msra.mxu0 %v467
  %546 = vmatprep.subr.mxu0 0.0
  %547 = vmatpush2.xpose.msra.mxu0 0.0
  %548 = vmatprep.subr.mxu0 0.0
  %549 = vmatpush2.xpose.msra.mxu0 0.0
  %550 = vmatprep.subr.mxu0 0.0
  %551 = vmatpush2.xpose.msra.mxu0 0.0
  %552 = vmatprep.subr.mxu0 0.0
  %553 = vmatpush2.xpose.msra.mxu0 0.0
  %554 = vmatprep.subr.mxu0 0.0
  %555 = vmatpush2.xpose.msra.mxu0 0.0
  %556 = vmatprep.subr.mxu0 0.0
  %557 = vmatpush2.xpose.msra.mxu0 0.0
  %558 = vmatprep.subr.mxu0 0.0
  %559 = vmatpush2.xpose.msra.mxu0 0.0
  %560 = vmatprep.subr.mxu0 0.0
  %561 = vmatpush2.xpose.msra.mxu0 0.0
  %562 = vmatprep.subr.mxu0 0.0
  %563 = vmatpush2.xpose.msra.mxu0 0.0
  %564 = vmatprep.subr.mxu0 0.0
  %565 = vmatpush2.xpose.msra.mxu0 0.0
  %566 = vmatprep.subr.mxu0 0.0
  %567 = vmatpush2.xpose.msra.mxu0 0.0
  %568 = vmatprep.subr.mxu0 0.0
  %569 = vmatpush2.xpose.msra.mxu0 0.0
  %570 = vmatprep.subr.mxu0 0.0
  %571 = vmatpush2.xpose.msra.mxu0 0.0
  %572 = vmatprep.subr.mxu0 0.0
  %573 = vmatpush2.xpose.msra.mxu0 0.0
  %574 = vmatprep.subr.mxu0 0.0
  %575 = vmatpush2.xpose.msra.mxu0 0.0
  %576 = vmatprep.subr.mxu0 0.0
  %577 = vmatpush2.xpose.msra.mxu0 0.0
  %578 = vmatprep.mubr.f32.mxu0 0.0
  %579 = vmatmul.mubr.f32.gmra.mxu0 %v464
  %v580 = vpop.f32.mrf.mxu0
  %v581 = vadd.f32 0.0, %v580
  %v582 = vpop.f32.mrf.mxu0
  %583 = vdwg.mxu0
  %v584 = vsub.f32 %v581, %v441
  %v585 = vld [vmem:[%s9] sm:$0xff]
  %587 = vset.pattern.permute.xlu0 0
  %588 = vperm.xlu0 %587, %v585
  %v589 = vpop.permute.xlu0 %588
  %v591 = vmul.f32 %v584, %v589
  %v592 = vld [vmem:[%s10] sm:$0xff]
  %v593 = vmul.f32 %v591, %v591
  %v594 = vmul.f32 %v593, 0.5
  %596 = vset.pattern.permute.xlu0 0
  %597 = vperm.xlu0 %596, %v592
  %v598 = vpop.permute.xlu0 %597
  %v600 = vsub.f32 %v598, %v594
  %v601 = vrot.slane %v600, 4
  %v602 = vadd.f32 %v600, %v601
  %v603 = vrot.slane %v602, 2
  %v604 = vadd.f32 %v602, %v603
  %v605 = vrot.slane %v604, 1
  %v606 = vadd.f32 %v604, %v605
  %607 = vst [vmem:[%s12] sm:$0x1] %v606
  // Predicated region
  $region46: #{_actor_forward_logp.1} parent=0 // pred_check
    _
  $region47: #{_actor_forward_logp.1} parent=0 // pred_check_branch
    %609 = sbr.rel (0) target = $region49
  $region48: #{_actor_forward_logp.1} parent=0 // pred_region
    _
  $region49: #{_actor_forward_logp.1} parent=0 // pred_fallthru
    _
  // Predicated region
  $region50: #{_actor_forward_logp.1} parent=0 // pred_check
    _
  $region51: #{_actor_forward_logp.1} parent=0 // pred_check_branch
    %611 = sbr.rel (0) target = $region53
  $region52: #{_actor_forward_logp.1} parent=0 // pred_region
    _
  $region53: #{_actor_forward_logp.1} parent=0 // pred_fallthru
    _
  // Predicated region
  $region54: #{_actor_forward_logp.1} parent=0 // pred_check
    _
  $region55: #{_actor_forward_logp.1} parent=0 // pred_check_branch
    %613 = sbr.rel (0) target = $region57
  $region56: #{_actor_forward_logp.1} parent=0 // pred_region
    _
  $region57: #{_actor_forward_logp.1} parent=0 // pred_fallthru
    _
  // Predicated region
  $region58: #{_actor_forward_logp.1} parent=0 // pred_check
    _
  $region59: #{_actor_forward_logp.1} parent=0 // pred_check_branch
    %615 = sbr.rel (0) target = $region61
  $region60: #{_actor_forward_logp.1} parent=0 // pred_region
    _
  $region61: #{_actor_forward_logp.1} parent=0 // pred_fallthru
    _

</llo_original>
